<compile_context>
chip_gen: v7x
topology: tpu7x:2x2x1
jax: 0.10.0
libtpu: 0.0.40
codegen_flags: <defaults>
</compile_context>

<pallas_src>
import functools

import jax
import jax.numpy as jnp
from jax.experimental import pallas as pl
from jax.experimental.pallas import tpu as pltpu


def _round_up(x, n):
    return ((x + n - 1) // n) * n


def diom_mlp_kernel(x_ref, w1_ref, b1_ref, w2_ref, b2_ref, w3_ref, o_ref):
    # lin1 + ReLU (f32 accumulation, f32 elementwise)
    h = jnp.dot(x_ref[...], w1_ref[...], preferred_element_type=jnp.float32)
    h = jnp.maximum(h + b1_ref[...], 0.0)
    # lin2 + ReLU  (cast activations down only at the MXU input)
    h = jnp.dot(h.astype(w2_ref.dtype), w2_ref[...],
                preferred_element_type=jnp.float32)
    h = jnp.maximum(h + b2_ref[...], 0.0)
    # lin3 (no bias), lane-dense (possibly zero-padded) output
    o_ref[...] = jnp.dot(h.astype(w3_ref.dtype), w3_ref[...],
                         preferred_element_type=jnp.float32).astype(o_ref.dtype)


def diom_forward(x, params, *, tile_b=None, compute_dtype=jnp.bfloat16,
                 out_dtype=jnp.float32):
    """x: [B, emb_size] float32. Returns [B, m*q] in out_dtype (default f32)."""
    w1, b1, w2, b2, w3 = params
    B, emb = x.shape
    l = w1.shape[1]
    mq = w3.shape[1]

    # --- lane-dense output: pad the projection to a multiple of 128 lanes ---
    mq_pad = _round_up(mq, 128)
    if mq_pad != mq:
        w3 = jnp.pad(w3, ((0, 0), (0, mq_pad - mq)))

    # --- batch tile: big (amortize per-step overhead, fill MXU M), mult of 8 -
    if tile_b is None:
        tile_b = min(_round_up(B, 8), 1024)
    assert tile_b % 8 == 0, "tile_b must be a multiple of 8 (sublane tiling)"
    B_pad = _round_up(B, tile_b)
    if B_pad != B:
        x = jnp.pad(x, ((0, B_pad - B), (0, 0)))
    grid = (B_pad // tile_b,)

    # --- dtype at the pallas_call boundary: bf16 inputs/weights, f32 biases --
    x = x.astype(compute_dtype)
    w1 = w1.astype(compute_dtype)
    w2 = w2.astype(compute_dtype)
    w3 = w3.astype(compute_dtype)
    b1 = b1.astype(jnp.float32)
    b2 = b2.astype(jnp.float32)

    itemsize = jnp.dtype(compute_dtype).itemsize
    out_itemsize = jnp.dtype(out_dtype).itemsize
    cost = pl.CostEstimate(
        flops=2 * B_pad * (emb * l + l * l + l * mq_pad),
        transcendentals=0,
        bytes_accessed=(B_pad * emb * itemsize                       # x in
                        + (emb * l + l * l + l * mq_pad) * itemsize  # weights
                        + 2 * l * 4                                  # biases
                        + B_pad * mq_pad * out_itemsize))            # out

    out = pl.pallas_call(
        diom_mlp_kernel,
        out_shape=jax.ShapeDtypeStruct((B_pad, mq_pad), out_dtype),
        grid_spec=pl.GridSpec(
            grid=grid,
            in_specs=[
                pl.BlockSpec((tile_b, emb), lambda i: (i, 0)),   # x tile
                pl.BlockSpec((emb, l), lambda i: (0, 0)),        # w1 (resident)
                pl.BlockSpec((1, l), lambda i: (0, 0)),          # b1
                pl.BlockSpec((l, l), lambda i: (0, 0)),          # w2
                pl.BlockSpec((1, l), lambda i: (0, 0)),          # b2
                pl.BlockSpec((l, mq_pad), lambda i: (0, 0)),     # w3 (padded)
            ],
            out_specs=pl.BlockSpec((tile_b, mq_pad), lambda i: (i, 0)),
        ),
        compiler_params=pltpu.CompilerParams(
            dimension_semantics=("parallel",),
            vmem_limit_bytes=32 * 1024 * 1024),
        cost_estimate=cost,
    )(x, w1, b1, w2, b2, w3)

    return out[:B, :mq]


def init_params(key, emb_size, l, m, q):
    """Deterministic synthetic parameters (PyTorch nn.Linear-like uniform init).

    Stored already transposed to [in, out]."""
    k1, k2, k3, k4, k5 = jax.random.split(key, 5)

    def u(k, shape, fan_in):
        bound = 1.0 / jnp.sqrt(fan_in)
        return jax.random.uniform(k, shape, jnp.float32, -bound, bound)

    w1 = u(k1, (emb_size, l), emb_size)
    b1 = u(k2, (1, l), emb_size)
    w2 = u(k3, (l, l), l)
    b2 = u(k4, (1, l), l)
    w3 = u(k5, (l, m * q), l)          # lin3 has no bias
    return (w1, b1, w2, b2, w3)


def reference_forward(x, params):
    w1, b1, w2, b2, w3 = params
    h = jnp.maximum(x @ w1 + b1, 0.0)
    h = jnp.maximum(h @ w2 + b2, 0.0)
    return h @ w3


if __name__ == "__main__":
    # Small shapes consistent with the module: m=4, q=16, emb_size=32, l=32.
    m, q, emb_size, l = 4, 16, 32, 32
    batch = 50                      # non-multiple of the tile -> exercises padding

    key = jax.random.PRNGKey(0)
    kx, kp = jax.random.split(key)
    x = jax.random.normal(kx, (batch, emb_size), dtype=jnp.float32)
    params = init_params(kp, emb_size, l, m, q)

    ref = reference_forward(x, params)

    # tile_b=16 -> grid of 4 steps (pipelined, megacore-shardable) on tiny input.
    fwd = functools.partial(diom_forward, tile_b=16)

    # 1) f32 compute path: bit-accurate check against the reference.
    out_f32 = jax.block_until_ready(fwd(x, params, compute_dtype=jnp.float32))
    assert out_f32.shape == (batch, m * q)
    assert jnp.allclose(out_f32, ref, atol=1e-5, rtol=1e-5)

    # 2) default bf16-input / f32-accumulate fast path: looser tolerance.
    out_bf16 = jax.block_until_ready(fwd(x, params))
    assert out_bf16.shape == (batch, m * q)
    assert jnp.allclose(out_bf16, ref, atol=2e-2, rtol=2e-2)

    # 3) default tile selection path (single big tile for this tiny batch).
    out_auto = jax.block_until_ready(diom_forward(x, params))
    assert out_auto.shape == (batch, m * q)
    assert jnp.allclose(out_auto, ref, atol=2e-2, rtol=2e-2)

    print("KERNEL_OK")
</pallas_src>

<mosaic_0001>
module attributes {stable_mosaic.version = 11 : i64} {
  func.func @diom_mlp_kernel(%arg0: i32, %arg1: memref<16x32xf32, #tpu.memory_space<vmem>>, %arg2: memref<32x32xf32, #tpu.memory_space<vmem>>, %arg3: memref<1x32xf32, #tpu.memory_space<vmem>>, %arg4: memref<32x32xf32, #tpu.memory_space<vmem>>, %arg5: memref<1x32xf32, #tpu.memory_space<vmem>>, %arg6: memref<32x128xf32, #tpu.memory_space<vmem>>, %arg7: memref<16x128xf32, #tpu.memory_space<vmem>>) attributes {dimension_semantics = [#tpu.dimension_semantics<parallel>], iteration_bounds = array<i64: 4>, scalar_prefetch = 0 : i64, scratch_operands = 0 : i64, tpu.core_type = #tpu.core_type<tc>, window_params = [{transform_indices = @transform_0, window_bounds = array<i64: 16, 32>}, {pipeline_mode = #tpu.pipeline_mode<synchronous>, transform_indices = @transform_1, window_bounds = array<i64: 32, 32>}, {pipeline_mode = #tpu.pipeline_mode<synchronous>, transform_indices = @transform_2, window_bounds = array<i64: 1, 32>}, {pipeline_mode = #tpu.pipeline_mode<synchronous>, transform_indices = @transform_3, window_bounds = array<i64: 32, 32>}, {pipeline_mode = #tpu.pipeline_mode<synchronous>, transform_indices = @transform_4, window_bounds = array<i64: 1, 32>}, {pipeline_mode = #tpu.pipeline_mode<synchronous>, transform_indices = @transform_5, window_bounds = array<i64: 32, 128>}, {transform_indices = @transform_6, window_bounds = array<i64: 16, 128>}]} {
    %c0 = arith.constant 0 : index
    %c0_0 = arith.constant 0 : index
    %0 = vector.load %arg1[%c0, %c0_0] : memref<16x32xf32, #tpu.memory_space<vmem>>, vector<16x32xf32>
    %c0_1 = arith.constant 0 : index
    %c0_2 = arith.constant 0 : index
    %1 = vector.load %arg2[%c0_1, %c0_2] : memref<32x32xf32, #tpu.memory_space<vmem>>, vector<32x32xf32>
    %cst = arith.constant dense<0.000000e+00> : vector<16x32xf32>
    %2 = tpu.matmul %0, %1, %cst {dimension_numbers = #tpu.dot_dimension_numbers<[1], [0], [0], [1], [0, 0, 1, 1], [], []>} : vector<16x32xf32>, vector<32x32xf32>, vector<16x32xf32> -> vector<16x32xf32>
    %c0_3 = arith.constant 0 : index
    %c0_4 = arith.constant 0 : index
    %3 = vector.load %arg3[%c0_3, %c0_4] : memref<1x32xf32, #tpu.memory_space<vmem>>, vector<1x32xf32>
    %4 = vector.broadcast %3 : vector<1x32xf32> to vector<16x32xf32>
    %5 = arith.addf %2, %4 : vector<16x32xf32>
    %cst_5 = arith.constant 0.000000e+00 : f32
    %6 = vector.broadcast %cst_5 : f32 to vector<16x32xf32>
    %7 = arith.maximumf %5, %6 : vector<16x32xf32>
    %c0_6 = arith.constant 0 : index
    %c0_7 = arith.constant 0 : index
    %8 = vector.load %arg4[%c0_6, %c0_7] : memref<32x32xf32, #tpu.memory_space<vmem>>, vector<32x32xf32>
    %cst_8 = arith.constant dense<0.000000e+00> : vector<16x32xf32>
    %9 = tpu.matmul %7, %8, %cst_8 {dimension_numbers = #tpu.dot_dimension_numbers<[1], [0], [0], [1], [0, 0, 1, 1], [], []>} : vector<16x32xf32>, vector<32x32xf32>, vector<16x32xf32> -> vector<16x32xf32>
    %c0_9 = arith.constant 0 : index
    %c0_10 = arith.constant 0 : index
    %10 = vector.load %arg5[%c0_9, %c0_10] : memref<1x32xf32, #tpu.memory_space<vmem>>, vector<1x32xf32>
    %11 = vector.broadcast %10 : vector<1x32xf32> to vector<16x32xf32>
    %12 = arith.addf %9, %11 : vector<16x32xf32>
    %cst_11 = arith.constant 0.000000e+00 : f32
    %13 = vector.broadcast %cst_11 : f32 to vector<16x32xf32>
    %14 = arith.maximumf %12, %13 : vector<16x32xf32>
    %c0_12 = arith.constant 0 : index
    %c0_13 = arith.constant 0 : index
    %15 = vector.load %arg6[%c0_12, %c0_13] : memref<32x128xf32, #tpu.memory_space<vmem>>, vector<32x128xf32>
    %cst_14 = arith.constant dense<0.000000e+00> : vector<16x128xf32>
    %16 = tpu.matmul %14, %15, %cst_14 {dimension_numbers = #tpu.dot_dimension_numbers<[1], [0], [0], [1], [0, 0, 1, 1], [], []>} : vector<16x32xf32>, vector<32x128xf32>, vector<16x128xf32> -> vector<16x128xf32>
    %c0_15 = arith.constant 0 : index
    %c0_16 = arith.constant 0 : index
    %17 = vector.load %arg7[%c0_15, %c0_16] : memref<16x128xf32, #tpu.memory_space<vmem>>, vector<16x128xf32>
    tpu.vector_store %arg7[%c0_15, %c0_16], %16 {strides = array<i32>} : memref<16x128xf32, #tpu.memory_space<vmem>>, vector<16x128xf32>,
    return
  }
  func.func @transform_0(%arg0: i32) -> (i32, i32) {
    %c0_i32 = arith.constant 0 : i32
    %c0_i32_0 = arith.constant 0 : i32
    return %arg0, %c0_i32 : i32, i32
  }
  func.func @transform_1(%arg0: i32) -> (i32, i32) {
    %c0_i32 = arith.constant 0 : i32
    %c0_i32_0 = arith.constant 0 : i32
    %c0_i32_1 = arith.constant 0 : i32
    return %c0_i32, %c0_i32_0 : i32, i32
  }
  func.func @transform_2(%arg0: i32) -> (i32, i32) {
    %c0_i32 = arith.constant 0 : i32
    %c0_i32_0 = arith.constant 0 : i32
    %c0_i32_1 = arith.constant 0 : i32
    return %c0_i32, %c0_i32_0 : i32, i32
  }
  func.func @transform_3(%arg0: i32) -> (i32, i32) {
    %c0_i32 = arith.constant 0 : i32
    %c0_i32_0 = arith.constant 0 : i32
    %c0_i32_1 = arith.constant 0 : i32
    return %c0_i32, %c0_i32_0 : i32, i32
  }
  func.func @transform_4(%arg0: i32) -> (i32, i32) {
    %c0_i32 = arith.constant 0 : i32
    %c0_i32_0 = arith.constant 0 : i32
    %c0_i32_1 = arith.constant 0 : i32
    return %c0_i32, %c0_i32_0 : i32, i32
  }
  func.func @transform_5(%arg0: i32) -> (i32, i32) {
    %c0_i32 = arith.constant 0 : i32
    %c0_i32_0 = arith.constant 0 : i32
    %c0_i32_1 = arith.constant 0 : i32
    return %c0_i32, %c0_i32_0 : i32, i32
  }
  func.func @transform_6(%arg0: i32) -> (i32, i32) {
    %c0_i32 = arith.constant 0 : i32
    %c0_i32_0 = arith.constant 0 : i32
    return %arg0, %c0_i32 : i32, i32
  }
}

</mosaic_0001>

<llo_original>
// kernel: tpu_custom_call.1
$region0: #{tpu_custom_call.1}
  #allocation0 [shape = 'u32[]', space=smem, size = 0x4, offset = 0x4, fixed_abs, tag = 'smem constant byte address 0x4 - core index']
  #allocation1 [shape = 'u32[144,128]{1,0:T(1,128)}', space=vmem, size = 0x12000, scoped, tag = 'internal scratch']
  %s0 = inlined_call_operand.vmem [shape: f32[64,32], index: 0, kind: input, shape index: {}]
  %s1 = inlined_call_operand.vmem [shape: f32[32,32], index: 1, kind: input, shape index: {}]
  %s2 = inlined_call_operand.vmem [shape: f32[1,32], index: 2, kind: input, shape index: {}]
  %s3 = inlined_call_operand.vmem [shape: f32[32,32], index: 3, kind: input, shape index: {}]
  %s4 = inlined_call_operand.vmem [shape: f32[1,32], index: 4, kind: input, shape index: {}]
  %s5 = inlined_call_operand.vmem [shape: f32[32,128], index: 5, kind: input, shape index: {}]
  %s6 = inlined_call_operand.hbm [shape: f32[64,128], index: 6, kind: output, shape index: {}]
  %s7 = sld [smem:[#allocation0]]
  $region57: #{tpu_custom_call.1} parent=0
    _
  %s9 = ssub.s32 1, %s7
  %s10 = scalar_select 0, %s9, %s7
  $region1: #{tpu_custom_call.1} parent=0
    #allocation2 [shape = 'u8[16384]{0}', space=vmem, size = 0x4000, scoped, tag = 'output window, operand 0']
    #allocation3 [shape = 's32[2]{0}', space=sflag, size = 0x8, scoped, tag = 'scoped memory for tpu_custom_call.1']
    %11 = vsyncpa [#allocation3], 0
    %s12 = scalar_lea.sflag [#allocation3], 1
    %13 = vsyncpa %s12, 0
    loop: start=0, step=1, limit=6
    $region2: #{tpu_custom_call.1} parent=1 // loop_pre_header
      _
    $region3: #{tpu_custom_call.1} parent=1 // loop_header
      %s15 = sphi 0, %s19
      %p16 = scmp.ge.s32.totalorder %s15, 6
      %s25 = sphi 0, %s27
      %s28 = sphi 0, %s25
      %s29 = sphi 0, %s28
      %s45 = sphi 0, %s29
      %s49 = sphi 0, %s49
      %s51 = sphi 0, %s49
      %s52 = sphi 0, %s51
      %s66 = sphi 0, %s52
      %s70 = sphi 0, %s70
      %s72 = sphi 0, %s70
      %s73 = sphi 0, %s72
      %s87 = sphi 0, %s73
      %s91 = sphi 0, %s91
      %s93 = sphi 0, %s91
      %s94 = sphi 0, %s93
      %s108 = sphi 0, %s94
      %s112 = sphi 0, %s112
      %s114 = sphi 0, %s112
      %s115 = sphi 0, %s114
      %s129 = sphi 0, %s115
      %s133 = sphi 0, %s133
      %s135 = sphi 0, %s133
      %s136 = sphi 0, %s135
      %s150 = sphi 0, %s136
      %s156 = sphi 0, %s158
      %s159 = sphi 0, %s156
      %s160 = sphi 0, %s159
      %s176 = sphi 0, %s160
    $region4: #{tpu_custom_call.1} parent=1 // loop_header_branch
      %18 = sbr.rel (%p16) target = $region8
    $region5: #{tpu_custom_call.1} parent=1 // loop_body
      %s20 = ssub.s32 %s15, 1
      %s21 = ssub.s32 %s15, 2
      %s22 = sadd.s32 %s15, 1
      %s23 = ssub.s32 %s15, %s22
      %p24 = scmp.eq.s32.totalorder %s23, 0
      %s26 = sadd.s32 %s25, 1
      %s27 = scalar_select %p24, %s25, %s26
      %p30 = pneg %p24
      %p31 = scmp.eq.s32.totalorder %s15, 3
      %p32 = por %p30, %p31
      %p33 = scmp.ne.s32.totalorder %s25, %s28
      %p34 = scmp.eq.s32.totalorder %s15, 0
      %p35 = por %p33, %p34
      %p36 = scmp.ne.s32.totalorder %s25, %s28
      %p37 = scmp.eq.s32.totalorder %s20, 3
      %p38 = por %p36, %p37
      %p39 = scmp.ne.s32.totalorder %s28, %s29
      %p40 = scmp.eq.s32.totalorder %s20, 0
      %p41 = por %p39, %p40
      %p42 = scmp.ne.s32.totalorder %s28, %s29
      %p43 = scmp.eq.s32.totalorder %s21, 3
      %p44 = por %p42, %p43
      %p46 = scmp.ne.s32.totalorder %s29, %s45
      %p47 = scmp.eq.s32.totalorder %s21, 0
      %p48 = por %p46, %p47
      %s50 = sadd.s32 %s49, 1
      %p53 = scmp.eq.s32.totalorder %s15, 3
      %p54 = scmp.ne.s32.totalorder %s49, %s51
      %p55 = scmp.eq.s32.totalorder %s15, 0
      %p56 = por %p54, %p55
      %p57 = scmp.ne.s32.totalorder %s49, %s51
      %p58 = scmp.eq.s32.totalorder %s20, 3
      %p59 = por %p57, %p58
      %p60 = scmp.ne.s32.totalorder %s51, %s52
      %p61 = scmp.eq.s32.totalorder %s20, 0
      %p62 = por %p60, %p61
      %p63 = scmp.ne.s32.totalorder %s51, %s52
      %p64 = scmp.eq.s32.totalorder %s21, 3
      %p65 = por %p63, %p64
      %p67 = scmp.ne.s32.totalorder %s52, %s66
      %p68 = scmp.eq.s32.totalorder %s21, 0
      %p69 = por %p67, %p68
      %s71 = sadd.s32 %s70, 1
      %p74 = scmp.eq.s32.totalorder %s15, 3
      %p75 = scmp.ne.s32.totalorder %s70, %s72
      %p76 = scmp.eq.s32.totalorder %s15, 0
      %p77 = por %p75, %p76
      %p78 = scmp.ne.s32.totalorder %s70, %s72
      %p79 = scmp.eq.s32.totalorder %s20, 3
      %p80 = por %p78, %p79
      %p81 = scmp.ne.s32.totalorder %s72, %s73
      %p82 = scmp.eq.s32.totalorder %s20, 0
      %p83 = por %p81, %p82
      %p84 = scmp.ne.s32.totalorder %s72, %s73
      %p85 = scmp.eq.s32.totalorder %s21, 3
      %p86 = por %p84, %p85
      %p88 = scmp.ne.s32.totalorder %s73, %s87
      %p89 = scmp.eq.s32.totalorder %s21, 0
      %p90 = por %p88, %p89
      %s92 = sadd.s32 %s91, 1
      %p95 = scmp.eq.s32.totalorder %s15, 3
      %p96 = scmp.ne.s32.totalorder %s91, %s93
      %p97 = scmp.eq.s32.totalorder %s15, 0
      %p98 = por %p96, %p97
      %p99 = scmp.ne.s32.totalorder %s91, %s93
      %p100 = scmp.eq.s32.totalorder %s20, 3
      %p101 = por %p99, %p100
      %p102 = scmp.ne.s32.totalorder %s93, %s94
      %p103 = scmp.eq.s32.totalorder %s20, 0
      %p104 = por %p102, %p103
      %p105 = scmp.ne.s32.totalorder %s93, %s94
      %p106 = scmp.eq.s32.totalorder %s21, 3
      %p107 = por %p105, %p106
      %p109 = scmp.ne.s32.totalorder %s94, %s108
      %p110 = scmp.eq.s32.totalorder %s21, 0
      %p111 = por %p109, %p110
      %s113 = sadd.s32 %s112, 1
      %p116 = scmp.eq.s32.totalorder %s15, 3
      %p117 = scmp.ne.s32.totalorder %s112, %s114
      %p118 = scmp.eq.s32.totalorder %s15, 0
      %p119 = por %p117, %p118
      %p120 = scmp.ne.s32.totalorder %s112, %s114
      %p121 = scmp.eq.s32.totalorder %s20, 3
      %p122 = por %p120, %p121
      %p123 = scmp.ne.s32.totalorder %s114, %s115
      %p124 = scmp.eq.s32.totalorder %s20, 0
      %p125 = por %p123, %p124
      %p126 = scmp.ne.s32.totalorder %s114, %s115
      %p127 = scmp.eq.s32.totalorder %s21, 3
      %p128 = por %p126, %p127
      %p130 = scmp.ne.s32.totalorder %s115, %s129
      %p131 = scmp.eq.s32.totalorder %s21, 0
      %p132 = por %p130, %p131
      %s134 = sadd.s32 %s133, 1
      %p137 = scmp.eq.s32.totalorder %s15, 3
      %p138 = scmp.ne.s32.totalorder %s133, %s135
      %p139 = scmp.eq.s32.totalorder %s15, 0
      %p140 = por %p138, %p139
      %p141 = scmp.ne.s32.totalorder %s133, %s135
      %p142 = scmp.eq.s32.totalorder %s20, 3
      %p143 = por %p141, %p142
      %p144 = scmp.ne.s32.totalorder %s135, %s136
      %p145 = scmp.eq.s32.totalorder %s20, 0
      %p146 = por %p144, %p145
      %p147 = scmp.ne.s32.totalorder %s135, %s136
      %p148 = scmp.eq.s32.totalorder %s21, 3
      %p149 = por %p147, %p148
      %p151 = scmp.ne.s32.totalorder %s136, %s150
      %p152 = scmp.eq.s32.totalorder %s21, 0
      %p153 = por %p151, %p152
      %s154 = ssub.s32 %s15, %s22
      %p155 = scmp.eq.s32.totalorder %s154, 0
      %s157 = sadd.s32 %s156, 1
      %s158 = scalar_select %p155, %s156, %s157
      %p161 = pneg %p155
      %p162 = scmp.eq.s32.totalorder %s15, 3
      %p163 = por %p161, %p162
      %p164 = scmp.ne.s32.totalorder %s156, %s159
      %p165 = scmp.eq.s32.totalorder %s15, 0
      %p166 = por %p164, %p165
      %p167 = scmp.ne.s32.totalorder %s156, %s159
      %p168 = scmp.eq.s32.totalorder %s20, 3
      %p169 = por %p167, %p168
      %p170 = scmp.ne.s32.totalorder %s159, %s160
      %p171 = scmp.eq.s32.totalorder %s20, 0
      %p172 = por %p170, %p171
      %p173 = scmp.ne.s32.totalorder %s159, %s160
      %p174 = scmp.eq.s32.totalorder %s21, 3
      %p175 = por %p173, %p174
      %p177 = scmp.ne.s32.totalorder %s160, %s176
      %p178 = scmp.eq.s32.totalorder %s21, 0
      %p179 = por %p177, %p178
      %p180 = scmp.le.s32.totalorder 1, %s15
      %p181 = scmp.lt.s32.totalorder %s15, 5
      %p182 = pnand %p180, %p181
      %p183 = pneg %p182
      // Predicated region
      $region9: #{tpu_custom_call.1} parent=5 // pred_check
        _
      $region10: #{tpu_custom_call.1} parent=5 // pred_check_branch
        %185 = sbr.rel (%p182) target = $region12
      $region11: #{tpu_custom_call.1} parent=5 // pred_region
        %s186 = ssub.s32 %s15, 1
        // Predicated region
        $region13: #{tpu_custom_call.1} parent=11 // pred_check
          %p187 = pneg %p62
        $region14: #{tpu_custom_call.1} parent=11 // pred_check_branch
          %189 = sbr.rel (%p187) target = $region16
        $region15: #{tpu_custom_call.1} parent=11 // pred_region
          _
        $region16: #{tpu_custom_call.1} parent=11 // pred_fallthru
          _
        // Predicated region
        $region17: #{tpu_custom_call.1} parent=11 // pred_check
          %p190 = pneg %p83
        $region18: #{tpu_custom_call.1} parent=11 // pred_check_branch
          %192 = sbr.rel (%p190) target = $region20
        $region19: #{tpu_custom_call.1} parent=11 // pred_region
          _
        $region20: #{tpu_custom_call.1} parent=11 // pred_fallthru
          _
        // Predicated region
        $region21: #{tpu_custom_call.1} parent=11 // pred_check
          %p193 = pneg %p104
        $region22: #{tpu_custom_call.1} parent=11 // pred_check_branch
          %195 = sbr.rel (%p193) target = $region24
        $region23: #{tpu_custom_call.1} parent=11 // pred_region
          _
        $region24: #{tpu_custom_call.1} parent=11 // pred_fallthru
          _
        // Predicated region
        $region25: #{tpu_custom_call.1} parent=11 // pred_check
          %p196 = pneg %p125
        $region26: #{tpu_custom_call.1} parent=11 // pred_check_branch
          %198 = sbr.rel (%p196) target = $region28
        $region27: #{tpu_custom_call.1} parent=11 // pred_region
          _
        $region28: #{tpu_custom_call.1} parent=11 // pred_fallthru
          _
        // Predicated region
        $region29: #{tpu_custom_call.1} parent=11 // pred_check
          %p199 = pneg %p146
        $region30: #{tpu_custom_call.1} parent=11 // pred_check_branch
          %201 = sbr.rel (%p199) target = $region32
        $region31: #{tpu_custom_call.1} parent=11 // pred_region
          _
        $region32: #{tpu_custom_call.1} parent=11 // pred_fallthru
          _
      $region12: #{tpu_custom_call.1} parent=5 // pred_fallthru
        _
      %p202 = scmp.lt.s32.totalorder %s15, 4
      // Predicated region
      $region33: #{tpu_custom_call.1} parent=5 // pred_check
        %p203 = pneg %p202
      $region34: #{tpu_custom_call.1} parent=5 // pred_check_branch
        %205 = sbr.rel (%p203) target = $region36
      $region35: #{tpu_custom_call.1} parent=5 // pred_region
        // Predicated region
        $region37: #{tpu_custom_call.1} parent=35 // pred_check
          %p206 = pneg %p35
        $region38: #{tpu_custom_call.1} parent=35 // pred_check_branch
          %208 = sbr.rel (%p206) target = $region40
        $region39: #{tpu_custom_call.1} parent=35 // pred_region
          %s209 = smul.u32 2, %s15
          %p210 = scmp.lt.s32.totalorder %s209, 7
          %s211 = scalar_select %p210, %s209, 7
          %s212 = smul.addr %s211, 8
          %s213 = scalar_lea.vmem %s0, %s212
          %s214 = smul.u32 2, %s15
        $region40: #{tpu_custom_call.1} parent=35 // pred_fallthru
          _
      $region36: #{tpu_custom_call.1} parent=5 // pred_fallthru
        _
      %p215 = scmp.le.s32.totalorder 1, %s15
      %p216 = scmp.lt.s32.totalorder %s15, 5
      %p217 = pnand %p215, %p216
      %p218 = pneg %p217
      // Predicated region
      $region41: #{tpu_custom_call.1} parent=5 // pred_check
        _
      $region42: #{tpu_custom_call.1} parent=5 // pred_check_branch
        %220 = sbr.rel (%p217) target = $region44
      $region43: #{tpu_custom_call.1} parent=5 // pred_region
        %s221 = ssub.s32 %s15, 1
        %s222 = smul.u32 2, %s20
        %p223 = scmp.lt.s32.totalorder %s222, 7
        %s224 = scalar_select %p223, %s222, 7
        %s225 = smul.addr %s224, 8
        %s226 = scalar_lea.vmem %s0, %s225
        %p227 = pneg %p41
        %p228 = pneg %p38
        %p229 = pneg %p62
        %p230 = pneg %p59
        %p231 = pneg %p83
        %p232 = pneg %p80
        %p233 = pneg %p104
        %p234 = pneg %p101
        %p235 = pneg %p125
        %p236 = pneg %p122
        %p237 = pneg %p146
        %p238 = pneg %p143
        %p239 = pneg %p172
        %p240 = pneg %p169
        %s241 = sand.u32 %s159, 1
        %s242 = scalar_lea.sflag [#allocation3], %s241
        %s243 = sand.u32 %s159, 1
        %s244 = smul.addr %s243, 16
        %s245 = scalar_lea.vmem [#allocation2], %s244
        %s246 = smul.u32 2, %s20
        %p247 = scmp.lt.s32.totalorder %s246, 7
        %s248 = scalar_select %p247, %s246, 7
        %s249 = smul.addr %s248, 8
        %s250 = scalar_lea.vmem %s0, %s249
        %s251 = smul.u32 2, %s20
        %s252 = smul.u32 2, %s20
        %v253 = vld [vmem:[%s250] sm:$0xff]
        %v254 = vld [vmem:[%s250 + $0x8] sm:$0xff]
        %v255 = vld [vmem:[%s1] sm:$0xff]
        %v256 = vld [vmem:[%s1 + $0x8] sm:$0xff]
        %v257 = vld [vmem:[%s1 + $0x10] sm:$0xff]
        %v258 = vld [vmem:[%s1 + $0x18] sm:$0xff]
        %v259 = vld [vmem:[%s2] sm:$0x1]
        %v261 = vlaneseq
        %v262 = vshrl.u32 %v261, 7
        %v263 = vsub.s32 0, %v262
        %v264 = vrot.slane %v259, %v263
        %vm266 = vcmask 261120
        %v268 = vsel %vm266, %v253, 0
        %v271 = vsel %vm266, %v254, 0
        %273 = vmatprep.subr.mxu0 0.0
        %274 = vmatpush1.msra.mxu0 %v255
        %275 = vmatprep.subr.mxu0 0.0
        %276 = vmatpush1.msra.mxu0 %v256
        %277 = vmatprep.subr.mxu0 0.0
        %278 = vmatpush1.msra.mxu0 %v257
        %279 = vmatprep.subr.mxu0 0.0
        %280 = vmatpush1.msra.mxu0 %v258
        %281 = vmatprep.subr.mxu0 0.0
        %282 = vmatpush1.msra.mxu0 0.0
        %283 = vmatprep.subr.mxu0 0.0
        %284 = vmatpush1.msra.mxu0 0.0
        %285 = vmatprep.subr.mxu0 0.0
        %286 = vmatpush1.msra.mxu0 0.0
        %287 = vmatprep.subr.mxu0 0.0
        %288 = vmatpush1.msra.mxu0 0.0
        %289 = vmatprep.subr.mxu0 0.0
        %290 = vmatpush1.msra.mxu0 0.0
        %291 = vmatprep.subr.mxu0 0.0
        %292 = vmatpush1.msra.mxu0 0.0
        %293 = vmatprep.subr.mxu0 0.0
        %294 = vmatpush1.msra.mxu0 0.0
        %295 = vmatprep.subr.mxu0 0.0
        %296 = vmatpush1.msra.mxu0 0.0
        %297 = vmatprep.subr.mxu0 0.0
        %298 = vmatpush1.msra.mxu0 0.0
        %299 = vmatprep.subr.mxu0 0.0
        %300 = vmatpush1.msra.mxu0 0.0
        %301 = vmatprep.subr.mxu0 0.0
        %302 = vmatpush1.msra.mxu0 0.0
        %303 = vmatprep.subr.mxu0 0.0
        %304 = vmatpush1.msra.mxu0 0.0
        %305 = vmatprep.subr.mxu0 0.0
        %306 = vmatpush1.msra.mxu0 0.0
        %307 = vmatprep.subr.mxu0 0.0
        %308 = vmatpush1.msra.mxu0 0.0
        %309 = vmatprep.subr.mxu0 0.0
        %310 = vmatpush1.msra.mxu0 0.0
        %311 = vmatprep.subr.mxu0 0.0
        %312 = vmatpush1.msra.mxu0 0.0
        %313 = vmatprep.subr.mxu0 0.0
        %314 = vmatpush1.msra.mxu0 0.0
        %315 = vmatprep.subr.mxu0 0.0
        %316 = vmatpush1.msra.mxu0 0.0
        %317 = vmatprep.subr.mxu0 0.0
        %318 = vmatpush1.msra.mxu0 0.0
        %319 = vmatprep.subr.mxu0 0.0
        %320 = vmatpush1.msra.mxu0 0.0
        %321 = vmatprep.subr.mxu0 0.0
        %322 = vmatpush1.msra.mxu0 0.0
        %323 = vmatprep.subr.mxu0 0.0
        %324 = vmatpush1.msra.mxu0 0.0
        %325 = vmatprep.subr.mxu0 0.0
        %326 = vmatpush1.msra.mxu0 0.0
        %327 = vmatprep.subr.mxu0 0.0
        %328 = vmatpush1.msra.mxu0 0.0
        %329 = vmatprep.subr.mxu0 0.0
        %330 = vmatpush1.msra.mxu0 0.0
        %331 = vmatprep.subr.mxu0 0.0
        %332 = vmatpush1.msra.mxu0 0.0
        %333 = vmatprep.subr.mxu0 0.0
        %334 = vmatpush1.msra.mxu0 0.0
        %335 = vmatprep.subr.mxu0 0.0
        %336 = vmatpush1.msra.mxu0 0.0
        %337 = vmatprep.mubr.f32.mxu0 0.0
        %338 = vmatmul.mubr.f32.gmra.mrb[0].mxu0 %v268
        %v339 = vpop.f32.mrb[0].mxu0
        %v340 = vadd.f32 %v264, %v339
        %v341 = vpop.f32.mrb[0].mxu0
        %342 = vmatprep.mubr.f32.mxu0 0.0
        %343 = vmatmul.mubr.f32.gmra.mrb[0].mxu0 %v271
        %v344 = vpop.f32.mrb[0].mxu0
        %v345 = vadd.f32 %v264, %v344
        %v346 = vpop.f32.mrb[0].mxu0
        %347 = vdwg.mxu0
        %v348 = vmax.f32 %v340, 0.0
        %v349 = vmax.f32 %v345, 0.0
        %v350 = vld [vmem:[%s3] sm:$0xff]
        %v351 = vld [vmem:[%s3 + $0x8] sm:$0xff]
        %v352 = vld [vmem:[%s3 + $0x10] sm:$0xff]
        %v353 = vld [vmem:[%s3 + $0x18] sm:$0xff]
        %v354 = vld [vmem:[%s4] sm:$0x1]
        %v356 = vlaneseq
        %v357 = vshrl.u32 %v356, 7
        %v358 = vsub.s32 0, %v357
        %v359 = vrot.slane %v354, %v358
        %v362 = vsel %vm266, %v348, 0
        %v365 = vsel %vm266, %v349, 0
        %367 = vmatprep.subr.mxu0 0.0
        %368 = vmatpush1.msra.mxu0 %v350
        %369 = vmatprep.subr.mxu0 0.0
        %370 = vmatpush1.msra.mxu0 %v351
        %371 = vmatprep.subr.mxu0 0.0
        %372 = vmatpush1.msra.mxu0 %v352
        %373 = vmatprep.subr.mxu0 0.0
        %374 = vmatpush1.msra.mxu0 %v353
        %375 = vmatprep.subr.mxu0 0.0
        %376 = vmatpush1.msra.mxu0 0.0
        %377 = vmatprep.subr.mxu0 0.0
        %378 = vmatpush1.msra.mxu0 0.0
        %379 = vmatprep.subr.mxu0 0.0
        %380 = vmatpush1.msra.mxu0 0.0
        %381 = vmatprep.subr.mxu0 0.0
        %382 = vmatpush1.msra.mxu0 0.0
        %383 = vmatprep.subr.mxu0 0.0
        %384 = vmatpush1.msra.mxu0 0.0
        %385 = vmatprep.subr.mxu0 0.0
        %386 = vmatpush1.msra.mxu0 0.0
        %387 = vmatprep.subr.mxu0 0.0
        %388 = vmatpush1.msra.mxu0 0.0
        %389 = vmatprep.subr.mxu0 0.0
        %390 = vmatpush1.msra.mxu0 0.0
        %391 = vmatprep.subr.mxu0 0.0
        %392 = vmatpush1.msra.mxu0 0.0
        %393 = vmatprep.subr.mxu0 0.0
        %394 = vmatpush1.msra.mxu0 0.0
        %395 = vmatprep.subr.mxu0 0.0
        %396 = vmatpush1.msra.mxu0 0.0
        %397 = vmatprep.subr.mxu0 0.0
        %398 = vmatpush1.msra.mxu0 0.0
        %399 = vmatprep.subr.mxu0 0.0
        %400 = vmatpush1.msra.mxu0 0.0
        %401 = vmatprep.subr.mxu0 0.0
        %402 = vmatpush1.msra.mxu0 0.0
        %403 = vmatprep.subr.mxu0 0.0
        %404 = vmatpush1.msra.mxu0 0.0
        %405 = vmatprep.subr.mxu0 0.0
        %406 = vmatpush1.msra.mxu0 0.0
        %407 = vmatprep.subr.mxu0 0.0
        %408 = vmatpush1.msra.mxu0 0.0
        %409 = vmatprep.subr.mxu0 0.0
        %410 = vmatpush1.msra.mxu0 0.0
        %411 = vmatprep.subr.mxu0 0.0
        %412 = vmatpush1.msra.mxu0 0.0
        %413 = vmatprep.subr.mxu0 0.0
        %414 = vmatpush1.msra.mxu0 0.0
        %415 = vmatprep.subr.mxu0 0.0
        %416 = vmatpush1.msra.mxu0 0.0
        %417 = vmatprep.subr.mxu0 0.0
        %418 = vmatpush1.msra.mxu0 0.0
        %419 = vmatprep.subr.mxu0 0.0
        %420 = vmatpush1.msra.mxu0 0.0
        %421 = vmatprep.subr.mxu0 0.0
        %422 = vmatpush1.msra.mxu0 0.0
        %423 = vmatprep.subr.mxu0 0.0
        %424 = vmatpush1.msra.mxu0 0.0
        %425 = vmatprep.subr.mxu0 0.0
        %426 = vmatpush1.msra.mxu0 0.0
        %427 = vmatprep.subr.mxu0 0.0
        %428 = vmatpush1.msra.mxu0 0.0
        %429 = vmatprep.subr.mxu0 0.0
        %430 = vmatpush1.msra.mxu0 0.0
        %431 = vmatprep.mubr.f32.mxu0 0.0
        %432 = vmatmul.mubr.f32.gmra.mrb[0].mxu0 %v362
        %v433 = vpop.f32.mrb[0].mxu0
        %v434 = vadd.f32 %v359, %v433
        %v435 = vpop.f32.mrb[0].mxu0
        %436 = vmatprep.mubr.f32.mxu0 0.0
        %437 = vmatmul.mubr.f32.gmra.mrb[0].mxu0 %v365
        %v438 = vpop.f32.mrb[0].mxu0
        %v439 = vadd.f32 %v359, %v438
        %v440 = vpop.f32.mrb[0].mxu0
        %441 = vdwg.mxu0
        %v442 = vmax.f32 %v434, 0.0
        %v443 = vmax.f32 %v439, 0.0
        %v444 = vld [vmem:[%s5] sm:$0xff]
        %v445 = vld [vmem:[%s5 + $0x8] sm:$0xff]
        %v446 = vld [vmem:[%s5 + $0x10] sm:$0xff]
        %v447 = vld [vmem:[%s5 + $0x18] sm:$0xff]
        %v449 = vsel %vm266, %v442, 0
        %v452 = vsel %vm266, %v443, 0
        %454 = vmatprep.subr.mxu0 0.0
        %455 = vmatpush1.msra.mxu0 %v444
        %456 = vmatprep.subr.mxu0 0.0
        %457 = vmatpush1.msra.mxu0 %v445
        %458 = vmatprep.subr.mxu0 0.0
        %459 = vmatpush1.msra.mxu0 %v446
        %460 = vmatprep.subr.mxu0 0.0
        %461 = vmatpush1.msra.mxu0 %v447
        %462 = vmatprep.subr.mxu0 0.0
        %463 = vmatpush1.msra.mxu0 0.0
        %464 = vmatprep.subr.mxu0 0.0
        %465 = vmatpush1.msra.mxu0 0.0
        %466 = vmatprep.subr.mxu0 0.0
        %467 = vmatpush1.msra.mxu0 0.0
        %468 = vmatprep.subr.mxu0 0.0
        %469 = vmatpush1.msra.mxu0 0.0
        %470 = vmatprep.subr.mxu0 0.0
        %471 = vmatpush1.msra.mxu0 0.0
        %472 = vmatprep.subr.mxu0 0.0
        %473 = vmatpush1.msra.mxu0 0.0
        %474 = vmatprep.subr.mxu0 0.0
        %475 = vmatpush1.msra.mxu0 0.0
        %476 = vmatprep.subr.mxu0 0.0
        %477 = vmatpush1.msra.mxu0 0.0
        %478 = vmatprep.subr.mxu0 0.0
        %479 = vmatpush1.msra.mxu0 0.0
        %480 = vmatprep.subr.mxu0 0.0
        %481 = vmatpush1.msra.mxu0 0.0
        %482 = vmatprep.subr.mxu0 0.0
        %483 = vmatpush1.msra.mxu0 0.0
        %484 = vmatprep.subr.mxu0 0.0
        %485 = vmatpush1.msra.mxu0 0.0
        %486 = vmatprep.subr.mxu0 0.0
        %487 = vmatpush1.msra.mxu0 0.0
        %488 = vmatprep.subr.mxu0 0.0
        %489 = vmatpush1.msra.mxu0 0.0
        %490 = vmatprep.subr.mxu0 0.0
        %491 = vmatpush1.msra.mxu0 0.0
        %492 = vmatprep.subr.mxu0 0.0
        %493 = vmatpush1.msra.mxu0 0.0
        %494 = vmatprep.subr.mxu0 0.0
        %495 = vmatpush1.msra.mxu0 0.0
        %496 = vmatprep.subr.mxu0 0.0
        %497 = vmatpush1.msra.mxu0 0.0
        %498 = vmatprep.subr.mxu0 0.0
        %499 = vmatpush1.msra.mxu0 0.0
        %500 = vmatprep.subr.mxu0 0.0
        %501 = vmatpush1.msra.mxu0 0.0
        %502 = vmatprep.subr.mxu0 0.0
        %503 = vmatpush1.msra.mxu0 0.0
        %504 = vmatprep.subr.mxu0 0.0
        %505 = vmatpush1.msra.mxu0 0.0
        %506 = vmatprep.subr.mxu0 0.0
        %507 = vmatpush1.msra.mxu0 0.0
        %508 = vmatprep.subr.mxu0 0.0
        %509 = vmatpush1.msra.mxu0 0.0
        %510 = vmatprep.subr.mxu0 0.0
        %511 = vmatpush1.msra.mxu0 0.0
        %512 = vmatprep.subr.mxu0 0.0
        %513 = vmatpush1.msra.mxu0 0.0
        %514 = vmatprep.subr.mxu0 0.0
        %515 = vmatpush1.msra.mxu0 0.0
        %516 = vmatprep.subr.mxu0 0.0
        %517 = vmatpush1.msra.mxu0 0.0
        %518 = vmatprep.mubr.f32.mxu0 0.0
        %519 = vmatmul.mubr.f32.gmra.mrb[0].mxu0 %v449
        %v520 = vpop.f32.mrb[0].mxu0
        %v521 = vadd.f32 0.0, %v520
        %v522 = vpop.f32.mrb[0].mxu0
        %523 = vmatprep.mubr.f32.mxu0 0.0
        %524 = vmatmul.mubr.f32.gmra.mrb[0].mxu0 %v452
        %v525 = vpop.f32.mrb[0].mxu0
        %v526 = vadd.f32 0.0, %v525
        %v527 = vpop.f32.mrb[0].mxu0
        %528 = vdwg.mxu0
        %529 = vst [vmem:[%s245] sm:$0xff] %v521
        %530 = vst [vmem:[%s245 + $0x8] sm:$0xff] %v526
        %s531 = sand.u32 %s159, 1
        %s532 = scalar_lea.sflag [#allocation3], %s531
        %s533 = sand.u32 %s159, 1
        %s534 = smul.addr %s533, 16
        %s535 = scalar_lea.vmem [#allocation2], %s534
        // Predicated region
        $region45: #{tpu_custom_call.1} parent=43 // pred_check
          %p536 = pneg %p169
        $region46: #{tpu_custom_call.1} parent=43 // pred_check_branch
          %538 = sbr.rel (%p536) target = $region48
        $region47: #{tpu_custom_call.1} parent=43 // pred_region
          %s539 = smul.u32 2, %s20
          %s541 = ssub.s32 256, 256
          %542 = vsyncadd %s532, %s541
          %s543 = smul.addr %s539, 128
          %s544 = scalar_lea.hbm %s6, %s543
          %s545 = sshll.u32 %s535, 4
          %s546 = int_to_ptr.vmem [resolvable:$true] %s545
          %551 = dma.vmem_to_hbm [thread:$0]  %s546, 256, %s544, %s532, 128, 128, 8
        $region48: #{tpu_custom_call.1} parent=43 // pred_fallthru
          _
      $region44: #{tpu_custom_call.1} parent=5 // pred_fallthru
        _
      %p552 = scmp.le.s32.totalorder 2, %s15
      // Predicated region
      $region49: #{tpu_custom_call.1} parent=5 // pred_check
        %p553 = pneg %p552
      $region50: #{tpu_custom_call.1} parent=5 // pred_check_branch
        %555 = sbr.rel (%p553) target = $region52
      $region51: #{tpu_custom_call.1} parent=5 // pred_region
        %s556 = ssub.s32 %s15, 2
        // Predicated region
        $region53: #{tpu_custom_call.1} parent=51 // pred_check
          %p557 = pneg %p175
        $region54: #{tpu_custom_call.1} parent=51 // pred_check_branch
          %559 = sbr.rel (%p557) target = $region56
        $region55: #{tpu_custom_call.1} parent=51 // pred_region
          %s560 = sand.u32 %s160, 1
          %s561 = scalar_lea.sflag [#allocation3], %s560
          %s562 = sand.u32 %s160, 1
          %s563 = smul.addr %s562, 16
          %s564 = scalar_lea.vmem [#allocation2], %s563
          %565 = dma.done %s561, 256
        $region56: #{tpu_custom_call.1} parent=51 // pred_fallthru
          _
      $region52: #{tpu_custom_call.1} parent=5 // pred_fallthru
        _
    $region6: #{tpu_custom_call.1} parent=1 // loop_footer
      %s19 = sadd.s32 1, %s15
    $region7: #{tpu_custom_call.1} parent=1 // loop_footer_branch
      %14 = sbr.rel target = $region3
    $region8: #{tpu_custom_call.1} parent=1 // loop_exit
      _
    %566 = vsyncpa [#allocation3], 1
    %s567 = scalar_lea.sflag [#allocation3], 1
    %568 = vsyncpa %s567, 1

</llo_original>
